<compile_context>
chip_gen: v5e
topology: v5e:2x2
jax: 0.10.0
libtpu: 0.0.40
codegen_flags: <defaults>
</compile_context>

<pallas_src>
import math

import jax
import jax.numpy as jnp
from jax.experimental import pallas as pl
from jax.experimental.pallas import tpu as pltpu


def _round_up(x, m):
    return ((x + m - 1) // m) * m


# ----------------------------------------------------------------------------
# Fused multi-modality kernel: linear encoder + alpha scale + hyperbolic expmap
# ----------------------------------------------------------------------------
def _encoder_expmap_kernel(scalars_ref, x_ref, w_ref, b_ref, o_ref):
    # scalars_ref (SMEM f32[n_mod+1]): [exp(alpha_0), ..., exp(alpha_{n-1}),
    #                                   sqrt(exp(curv))]
    m = pl.program_id(0)
    alpha_exp = scalars_ref[m]
    sqrt_curv = scalars_ref[pl.num_programs(0)]

    # Single full-K MXU matmul (bf16 inputs, f32 result) + bias.
    feats = jnp.dot(x_ref[...], w_ref[...], preferred_element_type=jnp.float32)
    feats = feats + b_ref[...]                                  # [TM, D_out] f32

    # Lorentz exp_map0 with alpha folded into one per-row scale:
    #   feats_scaled = alpha_exp * feats
    #   rc  = sqrt(curv) * ||feats_scaled|| = (sqrt(curv)*alpha_exp) * ||feats||
    #   out = sinh(max(rc,eps)) / max(rc,eps) * feats_scaled
    eps = 1e-8
    norm = jnp.sqrt(jnp.sum(feats * feats, axis=-1, keepdims=True))   # [TM, 1]
    rc = (sqrt_curv * alpha_exp) * norm
    rc_c = jnp.maximum(rc, eps)

    # sinh(rc)/rc: the exp-difference form loses precision for small rc, so use
    # the Taylor series 1 + rc^2/6 below 1e-2 (series error ~1e-10 there).
    # NOTE: exp(rc) overflows f32 for rc > ~88 (same regime where jnp.sinh
    # would); fine for realistic feature norms.
    exp_pos = jnp.exp(rc_c)
    exp_neg = jnp.exp(-rc_c)
    inv_rc = pl.reciprocal(rc_c, approx=True)        # ~1e-4 rel err, EUP slot
    sinhc = jnp.where(rc_c < 1e-2,
                      1.0 + rc_c * rc_c * (1.0 / 6.0),
                      0.5 * (exp_pos - exp_neg) * inv_rc)
    o_ref[...] = ((alpha_exp * sinhc) * feats).astype(o_ref.dtype)


def encoder_expmap(x, w, b, alpha_exps, sqrt_curv):
    """Fused multi-modality linear encoder + hyperbolic exp_map0.

    x:          [n_mod, B, K]       (any float dtype, cast to bf16 here)
    w:          [n_mod, K, D_out]   bf16, pre-cast at parameter-init time
    b:          [n_mod, 1, D_out]   f32
    alpha_exps: [n_mod]             f32 (already exp'd; clamping done by caller)
    sqrt_curv:  scalar              f32
    Returns [n_mod, B, D_out] f32.
    """
    n_mod, B, K = x.shape
    assert w.shape[0] == n_mod and w.shape[1] == K
    D_out = w.shape[2]

    # Collapsed-K plan: the whole (K, D_out) bf16 weight tile stays resident in
    # VMEM per modality (double-buffered by the pipeline).
    # TODO(synk): add a K-streamed fallback (grid K axis, accumulate into the
    # resident f32 output tile) for encoders whose D_in is too large for VMEM.
    if B >= 256:
        TM = 256                         # fill the 256-wide MXU on v6e / v7x
    elif B >= 128:
        TM = 128
    else:
        TM = _round_up(B, 16)            # bf16 packs 2 rows per sublane
    M_pad = _round_up(B, TM)

    x = x.astype(jnp.bfloat16)
    if M_pad != B:
        x = jnp.concatenate(
            [x, jnp.zeros((n_mod, M_pad - B, K), jnp.bfloat16)], axis=1)

    scalars = jnp.concatenate(
        [alpha_exps.astype(jnp.float32).reshape(-1),
         jnp.reshape(sqrt_curv, (1,)).astype(jnp.float32)])

    grid = (n_mod, M_pad // TM)

    # Double-buffered working set must fit the v7x 32 MiB scoped-VMEM default.
    working_bytes = 2 * (TM * K * 2 + K * D_out * 2 + D_out * 4 + TM * D_out * 4)
    assert working_bytes < 24 * 1024 * 1024, (
        "weights too large for the collapsed-K path; needs a K-streamed variant")

    cost = pl.CostEstimate(
        flops=2 * n_mod * M_pad * K * D_out,
        transcendentals=3 * n_mod * M_pad,
        bytes_accessed=(n_mod * M_pad * K * 2                      # x
                        + n_mod * (M_pad // TM) * K * D_out * 2    # W re-read / M tile
                        + n_mod * D_out * 4                        # bias
                        + n_mod * M_pad * D_out * 4),              # out
    )

    out = pl.pallas_call(
        _encoder_expmap_kernel,
        out_shape=jax.ShapeDtypeStruct((n_mod, M_pad, D_out), jnp.float32),
        grid_spec=pltpu.PrefetchScalarGridSpec(
            num_scalar_prefetch=0,
            grid=grid,
            in_specs=[
                pl.BlockSpec(memory_space=pltpu.SMEM),                   # scalars
                pl.BlockSpec((None, TM, K), lambda m, i: (m, i, 0)),     # x tile
                pl.BlockSpec((None, K, D_out), lambda m, i: (m, 0, 0)),  # full W
                pl.BlockSpec((None, 1, D_out), lambda m, i: (m, 0, 0)),  # bias
            ],
            out_specs=pl.BlockSpec((None, TM, D_out), lambda m, i: (m, i, 0)),
        ),
        compiler_params=pltpu.CompilerParams(
            dimension_semantics=("parallel", "parallel"),
            vmem_limit_bytes=32 * 1024 * 1024,
        ),
        cost_estimate=cost,
    )(scalars, x, w, b)
    return out[:, :B]


# ----------------------------------------------------------------------------
# SimpleCLIP_hyperbolic forward (glue in plain JAX, hot path in Pallas)
# ----------------------------------------------------------------------------
def simple_clip_hyperbolic_forward(params, image_input, dna_input, language_input):
    curv_min = math.log(params["curv_init"] / 10.0)
    curv_max = math.log(params["curv_init"] * 10.0)
    curv = jnp.clip(params["curv"], curv_min, curv_max)
    _curv = jnp.exp(curv)
    sqrt_curv = jnp.sqrt(_curv)

    visual_alpha = jnp.minimum(params["visual_alpha"], 0.0)
    textual_alpha = jnp.minimum(params["textual_alpha"], 0.0)
    dna_alpha = params["dna_alpha"]          # dna_alpha is NOT clamped in the reference

    # Fused dna + language call (identical encoder shapes -> one launch, and a
    # 2-long parallel modality grid axis that feeds both TensorCores on v7x).
    x_dl = jnp.stack([dna_input, language_input])                 # [2, B, D_dl]
    alphas_dl = jnp.stack([jnp.exp(dna_alpha), jnp.exp(textual_alpha)])
    dl_out = encoder_expmap(x_dl, params["w_dl"], params["b_dl"], alphas_dl, sqrt_curv)
    dna_output, language_output = dl_out[0], dl_out[1]

    # Image branch (image_encoder path, no open_clip_model): flatten NCHW.
    img_flat = image_input.reshape(image_input.shape[0], -1)[None]   # [1, B, C*H*W]
    image_output = encoder_expmap(
        img_flat, params["w_img"], params["b_img"],
        jnp.exp(visual_alpha)[None], sqrt_curv)[0]

    logit_scale = jnp.minimum(params["logit_scale"], 4.6052)
    _scale = jnp.exp(logit_scale)
    return image_output, dna_output, language_output, _scale, _curv


# ----------------------------------------------------------------------------
# Deterministic parameter init + example run + correctness check
# ----------------------------------------------------------------------------
if __name__ == "__main__":
    key = jax.random.PRNGKey(0)

    B = 2
    C, H, W = 4, 16, 16            # image NCHW
    D_IMG = C * H * W              # 1024 after flatten
    D_DL = 64                      # synthetic dna / language feature length
    EMBED_DIM = 128                # shared embedding dim (stand-in for 768)
    CURV_INIT = 1.0

    keys = jax.random.split(key, 9)
    w_img_f32 = jax.random.normal(keys[0], (D_IMG, EMBED_DIM), jnp.float32) * 0.02
    b_img_f32 = jax.random.normal(keys[1], (EMBED_DIM,), jnp.float32) * 0.01
    w_dna_f32 = jax.random.normal(keys[2], (D_DL, EMBED_DIM), jnp.float32) * 0.02
    b_dna_f32 = jax.random.normal(keys[3], (EMBED_DIM,), jnp.float32) * 0.01
    w_lang_f32 = jax.random.normal(keys[4], (D_DL, EMBED_DIM), jnp.float32) * 0.02
    b_lang_f32 = jax.random.normal(keys[5], (EMBED_DIM,), jnp.float32) * 0.01

    params = {
        # Encoder weights cast to bf16 + group-stacked ONCE here (never per call).
        "w_img": w_img_f32.astype(jnp.bfloat16)[None],                    # [1, D_IMG, E]
        "b_img": b_img_f32.reshape(1, 1, EMBED_DIM).astype(jnp.float32),  # [1, 1, E]
        "w_dl": jnp.stack([w_dna_f32, w_lang_f32]).astype(jnp.bfloat16),  # [2, D_DL, E]
        "b_dl": jnp.stack([b_dna_f32, b_lang_f32]).reshape(2, 1, EMBED_DIM).astype(jnp.float32),
        # SimpleCLIP_hyperbolic learnable scalars.
        "logit_scale": jnp.asarray(math.log(1.0 / 0.07), jnp.float32),
        "curv": jnp.asarray(math.log(CURV_INIT), jnp.float32),
        "curv_init": CURV_INIT,
        "visual_alpha": jnp.asarray(math.log(EMBED_DIM ** (-0.5)), jnp.float32),
        "textual_alpha": jnp.asarray(math.log(EMBED_DIM ** (-0.5)), jnp.float32),
        "dna_alpha": jnp.asarray(math.log(EMBED_DIM ** (-0.5)), jnp.float32),
    }

    image_input = jax.random.normal(keys[6], (B, C, H, W), jnp.float32)
    dna_input = jax.random.normal(keys[7], (B, D_DL), jnp.float32)
    language_input = jax.random.normal(keys[8], (B, D_DL), jnp.float32)

    outputs = simple_clip_hyperbolic_forward(
        params, image_input, dna_input, language_input
    )
    jax.block_until_ready(outputs)
    img_out, dna_out, lang_out, scale, curv_out = outputs

    # Pure-JAX f32 reference using the same bf16-quantized weights/inputs, so
    # only accumulation order and the approx reciprocal differ from the kernel.
    def _ref(x, w_bf16, b, alpha, sqrt_curv):
        xq = x.astype(jnp.bfloat16).astype(jnp.float32)
        feats = (xq @ w_bf16.astype(jnp.float32) + b) * jnp.exp(alpha)
        rc = sqrt_curv * jnp.linalg.norm(feats, axis=-1, keepdims=True)
        rc_c = jnp.maximum(rc, 1e-8)
        return jnp.sinh(rc_c) * feats / rc_c

    curv_c = jnp.clip(
        params["curv"], math.log(CURV_INIT / 10.0), math.log(CURV_INIT * 10.0)
    )
    sqrt_curv_ref = jnp.sqrt(jnp.exp(curv_c))
    ref_img = _ref(image_input.reshape(B, -1), params["w_img"][0], b_img_f32,
                   jnp.minimum(params["visual_alpha"], 0.0), sqrt_curv_ref)
    ref_dna = _ref(dna_input, params["w_dl"][0], b_dna_f32,
                   params["dna_alpha"], sqrt_curv_ref)
    ref_lang = _ref(language_input, params["w_dl"][1], b_lang_f32,
                    jnp.minimum(params["textual_alpha"], 0.0), sqrt_curv_ref)

    assert img_out.shape == (B, EMBED_DIM)
    assert dna_out.shape == (B, EMBED_DIM)
    assert lang_out.shape == (B, EMBED_DIM)
    assert jnp.allclose(img_out, ref_img, atol=3e-3, rtol=3e-2), "image mismatch"
    assert jnp.allclose(dna_out, ref_dna, atol=3e-3, rtol=3e-2), "dna mismatch"
    assert jnp.allclose(lang_out, ref_lang, atol=3e-3, rtol=3e-2), "language mismatch"
    assert jnp.allclose(scale, jnp.exp(jnp.minimum(params["logit_scale"], 4.6052)))
    assert jnp.allclose(curv_out, jnp.exp(curv_c))

    print("KERNEL_OK")
</pallas_src>

<mosaic_0001>
module attributes {stable_mosaic.version = 11 : i64} {
  func.func @_encoder_expmap_kernel(%arg0: i32, %arg1: i32, %arg2: memref<3xf32, #tpu.memory_space<smem>>, %arg3: memref<1x16x64xbf16, #tpu.memory_space<vmem>>, %arg4: memref<1x64x128xbf16, #tpu.memory_space<vmem>>, %arg5: memref<1x1x128xf32, #tpu.memory_space<vmem>>, %arg6: memref<1x16x128xf32, #tpu.memory_space<vmem>>) attributes {dimension_semantics = [#tpu.dimension_semantics<parallel>, #tpu.dimension_semantics<parallel>], iteration_bounds = array<i64: 2, 1>, scalar_prefetch = 0 : i64, scratch_operands = 0 : i64, tpu.core_type = #tpu.core_type<tc>, window_params = [{transform_indices = @transform_0, window_bounds = array<i64: 3>}, {transform_indices = @transform_1, window_bounds = array<i64: 1, 16, 64>}, {transform_indices = @transform_2, window_bounds = array<i64: 1, 64, 128>}, {transform_indices = @transform_3, window_bounds = array<i64: 1, 1, 128>}, {transform_indices = @transform_4, window_bounds = array<i64: 1, 16, 128>}]} {
    %0 = arith.index_cast %arg0 : i32 to index
    %1 = memref.load %arg2[%0] : memref<3xf32, #tpu.memory_space<smem>>
    %c2 = arith.constant 2 : index
    %2 = memref.load %arg2[%c2] : memref<3xf32, #tpu.memory_space<smem>>
    %c0 = arith.constant 0 : index
    %c0_0 = arith.constant 0 : index
    %c0_1 = arith.constant 0 : index
    %3 = vector.load %arg3[%c0, %c0_0, %c0_1] : memref<1x16x64xbf16, #tpu.memory_space<vmem>>, vector<1x16x64xbf16>
    %4 = vector.shape_cast %3 : vector<1x16x64xbf16> to vector<16x64xbf16>
    %c0_2 = arith.constant 0 : index
    %c0_3 = arith.constant 0 : index
    %c0_4 = arith.constant 0 : index
    %5 = vector.load %arg4[%c0_2, %c0_3, %c0_4] : memref<1x64x128xbf16, #tpu.memory_space<vmem>>, vector<1x64x128xbf16>
    %6 = vector.shape_cast %5 : vector<1x64x128xbf16> to vector<64x128xbf16>
    %cst = arith.constant dense<0.000000e+00> : vector<16x128xf32>
    %7 = tpu.matmul %4, %6, %cst {dimension_numbers = #tpu.dot_dimension_numbers<[1], [0], [0], [1], [0, 0, 1, 1], [], []>} : vector<16x64xbf16>, vector<64x128xbf16>, vector<16x128xf32> -> vector<16x128xf32>
    %c0_5 = arith.constant 0 : index
    %c0_6 = arith.constant 0 : index
    %c0_7 = arith.constant 0 : index
    %8 = vector.load %arg5[%c0_5, %c0_6, %c0_7] : memref<1x1x128xf32, #tpu.memory_space<vmem>>, vector<1x1x128xf32>
    %9 = vector.shape_cast %8 : vector<1x1x128xf32> to vector<1x128xf32>
    %10 = vector.broadcast %9 : vector<1x128xf32> to vector<16x128xf32>
    %11 = arith.addf %7, %10 : vector<16x128xf32>
    %12 = arith.mulf %11, %11 : vector<16x128xf32>
    %cst_8 = arith.constant dense<0.000000e+00> : vector<16xf32>
    %13 = vector.multi_reduction <add>, %12, %cst_8 [1] : vector<16x128xf32> to vector<16xf32>
    %14 = vector.shape_cast %13 : vector<16xf32> to vector<16x1xf32>
    %15 = math.sqrt %14 : vector<16x1xf32>
    %16 = arith.mulf %2, %1 : f32
    %17 = vector.broadcast %16 : f32 to vector<16x1xf32>
    %18 = arith.mulf %17, %15 : vector<16x1xf32>
    %cst_9 = arith.constant 9.99999993E-9 : f32
    %19 = vector.broadcast %cst_9 : f32 to vector<16x1xf32>
    %20 = arith.maximumf %18, %19 : vector<16x1xf32>
    %21 = math.exp %20 : vector<16x1xf32>
    %cst_10 = arith.constant 0.000000e+00 : f32
    %22 = vector.broadcast %cst_10 : f32 to vector<16x1xf32>
    %23 = arith.subf %22, %20 : vector<16x1xf32>
    %24 = math.exp %23 : vector<16x1xf32>
    %25 = tpu.reciprocal %20 {approx = true} : vector<16x1xf32> -> vector<16x1xf32>
    %cst_11 = arith.constant 0.00999999977 : f32
    %26 = vector.broadcast %cst_11 : f32 to vector<16x1xf32>
    %27 = arith.cmpf olt, %20, %26 : vector<16x1xf32>
    %28 = arith.mulf %20, %20 : vector<16x1xf32>
    %cst_12 = arith.constant 0.166666672 : f32
    %29 = vector.broadcast %cst_12 : f32 to vector<16x1xf32>
    %30 = arith.mulf %28, %29 : vector<16x1xf32>
    %cst_13 = arith.constant 1.000000e+00 : f32
    %31 = vector.broadcast %cst_13 : f32 to vector<16x1xf32>
    %32 = arith.addf %31, %30 : vector<16x1xf32>
    %33 = arith.subf %21, %24 : vector<16x1xf32>
    %cst_14 = arith.constant 5.000000e-01 : f32
    %34 = vector.broadcast %cst_14 : f32 to vector<16x1xf32>
    %35 = arith.mulf %34, %33 : vector<16x1xf32>
    %36 = arith.mulf %35, %25 : vector<16x1xf32>
    %37 = arith.select %27, %32, %36 : vector<16x1xi1>, vector<16x1xf32>
    %38 = vector.broadcast %1 : f32 to vector<16x1xf32>
    %39 = arith.mulf %38, %37 : vector<16x1xf32>
    %40 = vector.broadcast %39 : vector<16x1xf32> to vector<16x128xf32>
    %41 = arith.mulf %40, %11 : vector<16x128xf32>
    %c0_15 = arith.constant 0 : index
    %c0_16 = arith.constant 0 : index
    %c0_17 = arith.constant 0 : index
    %42 = vector.load %arg6[%c0_15, %c0_16, %c0_17] : memref<1x16x128xf32, #tpu.memory_space<vmem>>, vector<1x16x128xf32>
    %43 = vector.shape_cast %42 : vector<1x16x128xf32> to vector<16x128xf32>
    %44 = vector.shape_cast %41 : vector<16x128xf32> to vector<1x16x128xf32>
    tpu.vector_store %arg6[%c0_15, %c0_16, %c0_17], %44 {strides = array<i32>} : memref<1x16x128xf32, #tpu.memory_space<vmem>>, vector<1x16x128xf32>,
    return
  }
  func.func @transform_0(%arg0: i32, %arg1: i32) -> i32 {
    %c0_i32 = arith.constant 0 : i32
    %c0_i32_0 = arith.constant 0 : i32
    return %c0_i32 : i32
  }
  func.func @transform_1(%arg0: i32, %arg1: i32) -> (i32, i32, i32) {
    %c0_i32 = arith.constant 0 : i32
    %c0_i32_0 = arith.constant 0 : i32
    return %arg0, %arg1, %c0_i32 : i32, i32, i32
  }
  func.func @transform_2(%arg0: i32, %arg1: i32) -> (i32, i32, i32) {
    %c0_i32 = arith.constant 0 : i32
    %c0_i32_0 = arith.constant 0 : i32
    %c0_i32_1 = arith.constant 0 : i32
    return %arg0, %c0_i32, %c0_i32_0 : i32, i32, i32
  }
  func.func @transform_3(%arg0: i32, %arg1: i32) -> (i32, i32, i32) {
    %c0_i32 = arith.constant 0 : i32
    %c0_i32_0 = arith.constant 0 : i32
    %c0_i32_1 = arith.constant 0 : i32
    return %arg0, %c0_i32, %c0_i32_0 : i32, i32, i32
  }
  func.func @transform_4(%arg0: i32, %arg1: i32) -> (i32, i32, i32) {
    %c0_i32 = arith.constant 0 : i32
    %c0_i32_0 = arith.constant 0 : i32
    return %arg0, %arg1, %c0_i32 : i32, i32, i32
  }
}

</mosaic_0001>

<llo_original>
// kernel: tpu_custom_call.1
$region0: #{tpu_custom_call.1}
  #allocation0 [shape = 'u32[]', space=smem, size = 0x4, offset = 0x4, fixed_abs, tag = 'smem constant byte address 0x4 - core index']
  #allocation1 [shape = 'u32[72,128]{1,0:T(1,128)}', space=vmem, size = 0x9000, scoped, tag = 'internal scratch']
  %s0 = inlined_call_operand.hbm [shape: f32[3], index: 0, kind: input, shape index: {}]
  %s1 = inlined_call_operand.hbm [shape: bf16[2,16,64], index: 1, kind: input, shape index: {}]
  %s2 = inlined_call_operand.hbm [shape: bf16[2,64,128], index: 2, kind: input, shape index: {}]
  %s3 = inlined_call_operand.vmem [shape: f32[2,1,128], index: 3, kind: input, shape index: {}]
  %s4 = inlined_call_operand.hbm [shape: f32[2,16,128], index: 4, kind: output, shape index: {}]
  %s5 = sld [smem:[#allocation0]]
  $region61: #{tpu_custom_call.1} parent=0
    _
  %s7 = ssub.s32 1, %s5
  %s8 = scalar_select 0, %s7, %s5
  $region1: #{tpu_custom_call.1} parent=0
    #allocation2 [shape = 'u8[512]{0}', space=smem, size = 0x200, scoped, tag = 'input window, operand 0, single buffered']
    #allocation3 [shape = 's32[2]{0}', space=sflag, size = 0x8, scoped, tag = 'scoped memory for tpu_custom_call.1']
    #allocation4 [shape = 's32[2]{0}', space=sflag, size = 0x8, scoped, tag = 'scoped memory for tpu_custom_call.1']
    #allocation5 [shape = 's32[2]{0}', space=sflag, size = 0x8, scoped, tag = 'scoped memory for tpu_custom_call.1']
    #allocation6 [shape = 'u8[8192]{0}', space=vmem, size = 0x2000, scoped, tag = 'input window, operand 1']
    #allocation7 [shape = 'u8[32768]{0}', space=vmem, size = 0x8000, scoped, tag = 'input window, operand 2']
    #allocation8 [shape = 's32[2]{0}', space=sflag, size = 0x8, scoped, tag = 'scoped memory for tpu_custom_call.1']
    #allocation9 [shape = 'u8[16384]{0}', space=vmem, size = 0x4000, scoped, tag = 'output window, operand 0']
    %9 = vsyncpa [#allocation5], 0
    %10 = vsyncpa [#allocation3], 0
    %s11 = scalar_lea.sflag [#allocation3], 1
    %12 = vsyncpa %s11, 0
    %13 = vsyncpa [#allocation8], 0
    %s14 = scalar_lea.sflag [#allocation8], 1
    %15 = vsyncpa %s14, 0
    %16 = vsyncpa [#allocation4], 0
    %s17 = scalar_lea.sflag [#allocation4], 1
    %18 = vsyncpa %s17, 0
    loop: start=0, step=1, limit=4
    $region2: #{tpu_custom_call.1} parent=1 // loop_pre_header
      _
    $region3: #{tpu_custom_call.1} parent=1 // loop_header
      %s20 = sphi 0, %s24
      %p21 = scmp.ge.s32.totalorder %s20, 4
      %s27 = sphi 0, %s39
      %s28 = sphi 0, %s35
      %s29 = sphi 0, %s27
      %s30 = sphi 0, %s28
      %s31 = sphi 0, %s29
      %s32 = sphi 0, %s30
      %s40 = sphi 0, %s40
      %s42 = sphi 0, %s40
      %s43 = sphi 0, %s42
      %s57 = sphi 0, %s43
      %s65 = sphi 0, %s67
      %s68 = sphi 0, %s65
      %s69 = sphi 0, %s68
      %s85 = sphi 0, %s69
      %s91 = sphi 0, %s93
      %s94 = sphi 0, %s91
      %s95 = sphi 0, %s94
      %s111 = sphi 0, %s95
      %s117 = sphi 0, %s119
      %s120 = sphi 0, %s117
      %s121 = sphi 0, %s120
      %s137 = sphi 0, %s121
      %s145 = sphi 0, %s147
      %s148 = sphi 0, %s145
      %s149 = sphi 0, %s148
      %s165 = sphi 0, %s149
    $region4: #{tpu_custom_call.1} parent=1 // loop_header_branch
      %23 = sbr.rel (%p21) target = $region8
    $region5: #{tpu_custom_call.1} parent=1 // loop_body
      %s25 = ssub.s32 %s20, 1
      %s26 = ssub.s32 %s20, 2
      %s33 = sadd.s32 1, %s28
      %p34 = scmp.ge.s32.totalorder %s33, 1
      %s35 = scalar_select %p34, 0, %s33
      %s36 = sadd.s32 1, %s27
      %s37 = scalar_select %p34, %s36, %s27
      %p38 = scmp.ge.s32.totalorder %s37, 2
      %s39 = scalar_select %p38, 0, %s37
      %s41 = sadd.s32 %s40, 1
      %p44 = scmp.eq.s32.totalorder %s20, 1
      %p45 = scmp.ne.s32.totalorder %s40, %s42
      %p46 = scmp.eq.s32.totalorder %s20, 0
      %p47 = por %p45, %p46
      %p48 = scmp.ne.s32.totalorder %s40, %s42
      %p49 = scmp.eq.s32.totalorder %s25, 1
      %p50 = por %p48, %p49
      %p51 = scmp.ne.s32.totalorder %s42, %s43
      %p52 = scmp.eq.s32.totalorder %s25, 0
      %p53 = por %p51, %p52
      %p54 = scmp.ne.s32.totalorder %s42, %s43
      %p55 = scmp.eq.s32.totalorder %s26, 1
      %p56 = por %p54, %p55
      %p58 = scmp.ne.s32.totalorder %s43, %s57
      %p59 = scmp.eq.s32.totalorder %s26, 0
      %p60 = por %p58, %p59
      %s61 = ssub.s32 %s27, %s39
      %s62 = ssub.s32 %s28, %s35
      %s63 = sor.u32 %s61, %s62
      %p64 = scmp.eq.s32.totalorder %s63, 0
      %s66 = sadd.s32 %s65, 1
      %s67 = scalar_select %p64, %s65, %s66
      %p70 = pneg %p64
      %p71 = scmp.eq.s32.totalorder %s20, 1
      %p72 = por %p70, %p71
      %p73 = scmp.ne.s32.totalorder %s65, %s68
      %p74 = scmp.eq.s32.totalorder %s20, 0
      %p75 = por %p73, %p74
      %p76 = scmp.ne.s32.totalorder %s65, %s68
      %p77 = scmp.eq.s32.totalorder %s25, 1
      %p78 = por %p76, %p77
      %p79 = scmp.ne.s32.totalorder %s68, %s69
      %p80 = scmp.eq.s32.totalorder %s25, 0
      %p81 = por %p79, %p80
      %p82 = scmp.ne.s32.totalorder %s68, %s69
      %p83 = scmp.eq.s32.totalorder %s26, 1
      %p84 = por %p82, %p83
      %p86 = scmp.ne.s32.totalorder %s69, %s85
      %p87 = scmp.eq.s32.totalorder %s26, 0
      %p88 = por %p86, %p87
      %s89 = ssub.s32 %s27, %s39
      %p90 = scmp.eq.s32.totalorder %s89, 0
      %s92 = sadd.s32 %s91, 1
      %s93 = scalar_select %p90, %s91, %s92
      %p96 = pneg %p90
      %p97 = scmp.eq.s32.totalorder %s20, 1
      %p98 = por %p96, %p97
      %p99 = scmp.ne.s32.totalorder %s91, %s94
      %p100 = scmp.eq.s32.totalorder %s20, 0
      %p101 = por %p99, %p100
      %p102 = scmp.ne.s32.totalorder %s91, %s94
      %p103 = scmp.eq.s32.totalorder %s25, 1
      %p104 = por %p102, %p103
      %p105 = scmp.ne.s32.totalorder %s94, %s95
      %p106 = scmp.eq.s32.totalorder %s25, 0
      %p107 = por %p105, %p106
      %p108 = scmp.ne.s32.totalorder %s94, %s95
      %p109 = scmp.eq.s32.totalorder %s26, 1
      %p110 = por %p108, %p109
      %p112 = scmp.ne.s32.totalorder %s95, %s111
      %p113 = scmp.eq.s32.totalorder %s26, 0
      %p114 = por %p112, %p113
      %s115 = ssub.s32 %s27, %s39
      %p116 = scmp.eq.s32.totalorder %s115, 0
      %s118 = sadd.s32 %s117, 1
      %s119 = scalar_select %p116, %s117, %s118
      %p122 = pneg %p116
      %p123 = scmp.eq.s32.totalorder %s20, 1
      %p124 = por %p122, %p123
      %p125 = scmp.ne.s32.totalorder %s117, %s120
      %p126 = scmp.eq.s32.totalorder %s20, 0
      %p127 = por %p125, %p126
      %p128 = scmp.ne.s32.totalorder %s117, %s120
      %p129 = scmp.eq.s32.totalorder %s25, 1
      %p130 = por %p128, %p129
      %p131 = scmp.ne.s32.totalorder %s120, %s121
      %p132 = scmp.eq.s32.totalorder %s25, 0
      %p133 = por %p131, %p132
      %p134 = scmp.ne.s32.totalorder %s120, %s121
      %p135 = scmp.eq.s32.totalorder %s26, 1
      %p136 = por %p134, %p135
      %p138 = scmp.ne.s32.totalorder %s121, %s137
      %p139 = scmp.eq.s32.totalorder %s26, 0
      %p140 = por %p138, %p139
      %s141 = ssub.s32 %s27, %s39
      %s142 = ssub.s32 %s28, %s35
      %s143 = sor.u32 %s141, %s142
      %p144 = scmp.eq.s32.totalorder %s143, 0
      %s146 = sadd.s32 %s145, 1
      %s147 = scalar_select %p144, %s145, %s146
      %p150 = pneg %p144
      %p151 = scmp.eq.s32.totalorder %s20, 1
      %p152 = por %p150, %p151
      %p153 = scmp.ne.s32.totalorder %s145, %s148
      %p154 = scmp.eq.s32.totalorder %s20, 0
      %p155 = por %p153, %p154
      %p156 = scmp.ne.s32.totalorder %s145, %s148
      %p157 = scmp.eq.s32.totalorder %s25, 1
      %p158 = por %p156, %p157
      %p159 = scmp.ne.s32.totalorder %s148, %s149
      %p160 = scmp.eq.s32.totalorder %s25, 0
      %p161 = por %p159, %p160
      %p162 = scmp.ne.s32.totalorder %s148, %s149
      %p163 = scmp.eq.s32.totalorder %s26, 1
      %p164 = por %p162, %p163
      %p166 = scmp.ne.s32.totalorder %s149, %s165
      %p167 = scmp.eq.s32.totalorder %s26, 0
      %p168 = por %p166, %p167
      %p169 = scmp.le.s32.totalorder 1, %s20
      %p170 = scmp.lt.s32.totalorder %s20, 3
      %p171 = pnand %p169, %p170
      %p172 = pneg %p171
      // Predicated region
      $region9: #{tpu_custom_call.1} parent=5 // pred_check
        _
      $region10: #{tpu_custom_call.1} parent=5 // pred_check_branch
        %174 = sbr.rel (%p171) target = $region12
      $region11: #{tpu_custom_call.1} parent=5 // pred_region
        %s175 = ssub.s32 %s20, 1
        // Predicated region
        $region13: #{tpu_custom_call.1} parent=11 // pred_check
          %p176 = pneg %p53
        $region14: #{tpu_custom_call.1} parent=11 // pred_check_branch
          %178 = sbr.rel (%p176) target = $region16
        $region15: #{tpu_custom_call.1} parent=11 // pred_region
          %180 = vsyncadd [#allocation5], 0
          %s182 = sshll.u32 %s0, 4
          %s183 = int_to_ptr.hbm [resolvable:$true] %s182
          %185 = dma.hbm_to_smem %s183, 16, [#allocation2], [#allocation5]
        $region16: #{tpu_custom_call.1} parent=11 // pred_fallthru
          _
      $region12: #{tpu_custom_call.1} parent=5 // pred_fallthru
        _
      %p186 = scmp.lt.s32.totalorder %s20, 2
      // Predicated region
      $region17: #{tpu_custom_call.1} parent=5 // pred_check
        %p187 = pneg %p186
      $region18: #{tpu_custom_call.1} parent=5 // pred_check_branch
        %189 = sbr.rel (%p187) target = $region20
      $region19: #{tpu_custom_call.1} parent=5 // pred_region
        // Predicated region
        $region21: #{tpu_custom_call.1} parent=19 // pred_check
          %p190 = pneg %p75
        $region22: #{tpu_custom_call.1} parent=19 // pred_check_branch
          %192 = sbr.rel (%p190) target = $region24
        $region23: #{tpu_custom_call.1} parent=19 // pred_region
          %s193 = sand.u32 %s65, 1
          %s194 = scalar_lea.sflag [#allocation3], %s193
          %s195 = sand.u32 %s65, 1
          %s196 = smul.addr %s195, 8
          %s197 = scalar_lea.vmem [#allocation6], %s196
          %s198 = smul.u32 2, %s28
          %200 = vsyncadd %s194, 0
          %s201 = smul.addr %s27, 2
          %s202 = sadd.s32 %s198, %s201
          %s203 = smul.addr %s202, 4
          %s204 = scalar_lea.hbm %s1, %s203
          %s205 = sshll.u32 %s204, 4
          %s206 = int_to_ptr.hbm [resolvable:$true] %s205
          %s207 = sshll.u32 %s197, 4
          %s208 = int_to_ptr.vmem [resolvable:$true] %s207
          %213 = dma.hbm_to_vmem [thread:$0]  %s206, 128, %s208, %s194, 64, 64, 4
        $region24: #{tpu_custom_call.1} parent=19 // pred_fallthru
          _
        // Predicated region
        $region25: #{tpu_custom_call.1} parent=19 // pred_check
          %p214 = pneg %p101
        $region26: #{tpu_custom_call.1} parent=19 // pred_check_branch
          %216 = sbr.rel (%p214) target = $region28
        $region27: #{tpu_custom_call.1} parent=19 // pred_region
          %s217 = sand.u32 %s91, 1
          %s218 = scalar_lea.sflag [#allocation8], %s217
          %s219 = sand.u32 %s91, 1
          %s220 = smul.addr %s219, 32
          %s221 = scalar_lea.vmem [#allocation7], %s220
          %223 = vsyncadd %s218, 0
          %s224 = smul.addr %s27, 8
          %s225 = smul.addr %s224, 4
          %s226 = scalar_lea.hbm %s2, %s225
          %s227 = sshll.u32 %s226, 4
          %s228 = int_to_ptr.hbm [resolvable:$true] %s227
          %s229 = sshll.u32 %s221, 4
          %s230 = int_to_ptr.vmem [resolvable:$true] %s229
          %235 = dma.hbm_to_vmem [thread:$0]  %s228, 512, %s230, %s218, 64, 64, 4
        $region28: #{tpu_custom_call.1} parent=19 // pred_fallthru
          _
        // Predicated region
        $region29: #{tpu_custom_call.1} parent=19 // pred_check
          %p236 = pneg %p127
        $region30: #{tpu_custom_call.1} parent=19 // pred_check_branch
          %238 = sbr.rel (%p236) target = $region32
        $region31: #{tpu_custom_call.1} parent=19 // pred_region
          %p239 = scmp.lt.s32.totalorder %s27, 1
          %s240 = scalar_select %p239, %s27, 1
          %s241 = scalar_lea.vmem %s3, %s240
        $region32: #{tpu_custom_call.1} parent=19 // pred_fallthru
          _
      $region20: #{tpu_custom_call.1} parent=5 // pred_fallthru
        _
      %p242 = scmp.le.s32.totalorder 1, %s20
      %p243 = scmp.lt.s32.totalorder %s20, 3
      %p244 = pnand %p242, %p243
      %p245 = pneg %p244
      // Predicated region
      $region33: #{tpu_custom_call.1} parent=5 // pred_check
        _
      $region34: #{tpu_custom_call.1} parent=5 // pred_check_branch
        %247 = sbr.rel (%p244) target = $region36
      $region35: #{tpu_custom_call.1} parent=5 // pred_region
        %s248 = ssub.s32 %s20, 1
        // Predicated region
        $region37: #{tpu_custom_call.1} parent=35 // pred_check
          %p249 = pneg %p53
        $region38: #{tpu_custom_call.1} parent=35 // pred_check_branch
          %251 = sbr.rel (%p249) target = $region40
        $region39: #{tpu_custom_call.1} parent=35 // pred_region
          %253 = dma.done [#allocation5], 16
        $region40: #{tpu_custom_call.1} parent=35 // pred_fallthru
          _
        %s254 = sand.u32 %s68, 1
        %s255 = scalar_lea.sflag [#allocation3], %s254
        %s256 = sand.u32 %s68, 1
        %s257 = smul.addr %s256, 8
        %s258 = scalar_lea.vmem [#allocation6], %s257
        // Predicated region
        $region41: #{tpu_custom_call.1} parent=35 // pred_check
          %p259 = pneg %p81
        $region42: #{tpu_custom_call.1} parent=35 // pred_check_branch
          %261 = sbr.rel (%p259) target = $region44
        $region43: #{tpu_custom_call.1} parent=35 // pred_region
          %263 = dma.done %s255, 128
        $region44: #{tpu_custom_call.1} parent=35 // pred_fallthru
          _
        %s264 = sand.u32 %s94, 1
        %s265 = scalar_lea.sflag [#allocation8], %s264
        %s266 = sand.u32 %s94, 1
        %s267 = smul.addr %s266, 32
        %s268 = scalar_lea.vmem [#allocation7], %s267
        // Predicated region
        $region45: #{tpu_custom_call.1} parent=35 // pred_check
          %p269 = pneg %p107
        $region46: #{tpu_custom_call.1} parent=35 // pred_check_branch
          %271 = sbr.rel (%p269) target = $region48
        $region47: #{tpu_custom_call.1} parent=35 // pred_region
          %273 = dma.done %s265, 512
        $region48: #{tpu_custom_call.1} parent=35 // pred_fallthru
          _
        %274 = sfence
        %p275 = pneg %p53
        %p276 = pneg %p50
        %s277 = sand.u32 %s68, 1
        %s278 = scalar_lea.sflag [#allocation3], %s277
        %s279 = sand.u32 %s68, 1
        %s280 = smul.addr %s279, 8
        %s281 = scalar_lea.vmem [#allocation6], %s280
        %p282 = pneg %p81
        %p283 = pneg %p78
        %s284 = sand.u32 %s94, 1
        %s285 = scalar_lea.sflag [#allocation8], %s284
        %s286 = sand.u32 %s94, 1
        %s287 = smul.addr %s286, 32
        %s288 = scalar_lea.vmem [#allocation7], %s287
        %p289 = pneg %p107
        %p290 = pneg %p104
        %p291 = scmp.lt.s32.totalorder %s29, 1
        %s292 = scalar_select %p291, %s29, 1
        %s293 = scalar_lea.vmem %s3, %s292
        %p294 = pneg %p133
        %p295 = pneg %p130
        %p296 = pneg %p161
        %p297 = pneg %p158
        %s298 = sand.u32 %s148, 1
        %s299 = scalar_lea.sflag [#allocation4], %s298
        %s300 = sand.u32 %s148, 1
        %s301 = smul.addr %s300, 16
        %s302 = scalar_lea.vmem [#allocation9], %s301
        %s303 = smul.u32 2, %s30
        %p304 = scmp.lt.s32.totalorder %s29, 1
        %s305 = scalar_select %p304, %s29, 1
        %s306 = scalar_lea.vmem %s3, %s305
        %s307 = smul.u32 2, %s30
        %s309 = sld [smem:[#allocation2 + %s29]]
        %s310 = sld [smem:[#allocation2 + $0x2]]
        %v311 = vld [vmem:[%s258] sm:$0xf]
        %v312 = vld [vmem:[%s258 + $0x4] sm:$0xf]
        %v313 = vld [vmem:[%s268] sm:$0xf]
        %v314 = vld [vmem:[%s268 + $0x4] sm:$0xf]
        %v315 = vld [vmem:[%s268 + $0x8] sm:$0xf]
        %v316 = vld [vmem:[%s268 + $0xc] sm:$0xf]
        %v317 = vld [vmem:[%s268 + $0x10] sm:$0xf]
        %v318 = vld [vmem:[%s268 + $0x14] sm:$0xf]
        %v319 = vld [vmem:[%s268 + $0x18] sm:$0xf]
        %v320 = vld [vmem:[%s268 + $0x1c] sm:$0xf]
        %v321 = vld [vmem:[%s306] sm:$0x1]
        %v323 = vperm.slane %v321, 0
        %v327 = vunpack.c.l.b16 %v311
        %v328 = vunpack.c.l.b16 %v312
        %v329 = vpack.c.b16 %v328, %v327
        %v338 = vunpack.c.l.b16 %v313
        %v339 = vunpack.c.l.b16 %v314
        %v340 = vunpack.c.l.b16 %v315
        %v341 = vunpack.c.l.b16 %v316
        %v342 = vunpack.c.l.b16 %v317
        %v343 = vunpack.c.l.b16 %v318
        %v344 = vunpack.c.l.b16 %v319
        %v345 = vunpack.c.l.b16 %v320
        %v346 = vpack.c.b16 %v339, %v338
        %v347 = vpack.c.b16 %v341, %v340
        %v348 = vpack.c.b16 %v343, %v342
        %v349 = vpack.c.b16 %v345, %v344
        %vm354 = vcmask 523264
        %v356 = vsel %vm354, %v329, 0
        %358 = vmatpush.bf16.msra.mxu0 0
        %359 = vmatpush.bf16.msra.mxu0 0
        %360 = vmatpush.bf16.msra.mxu0 0
        %361 = vmatpush.bf16.msra.mxu0 0
        %362 = vmatpush.bf16.msra.mxu0 %v349
        %363 = vmatpush.bf16.msra.mxu0 %v348
        %364 = vmatpush.bf16.msra.mxu0 %v347
        %365 = vmatpush.bf16.msra.mxu0 %v346
        %366 = vmatmul.bf16.gmra.mxu0 %v356
        %v367 = vpop.f32.mrf.mxu0
        %v368 = vadd.f32 %v323, %v367
        %v369 = vpop.f32.mrf.mxu0
        %v370 = vadd.f32 %v323, %v369
        %371 = vdwg.mxu0
        %v372 = vmul.f32 %v368, %v368
        %v373 = vmul.f32 %v370, %v370
        %374 = vadd.xlane.f32.xlu0 %v372
        %v375 = vpop.xlane.xlu0 %374
        %376 = vadd.xlane.f32.xlu0 %v373
        %v377 = vpop.xlane.xlu0 %376
        %v378 = vrsqrt.pop %v375
        %v379 = vmul.f32 %v378, %v375
        %v380 = vmul.f32 %v379, %v378
        %v381 = vmul.f32 0.5, %v380
        %v382 = vsub.f32 1.5, %v381
        %v383 = vmul.f32 %v378, %v382
        %v384 = vmul.f32 %v375, %v383
        %vm385 = vcmp.eq.f32.partialorder %v375, inf
        %v386 = vsel %vm385, %v375, %v384
        %vm387 = vcmp.eq.f32.partialorder %v375, 0.0
        %v388 = vand.u32 %v375, 2147483648
        %v389 = vsel %vm387, %v388, %v386
        %v390 = vrsqrt.pop %v377
        %v391 = vmul.f32 %v390, %v377
        %v392 = vmul.f32 %v391, %v390
        %v393 = vmul.f32 0.5, %v392
        %v394 = vsub.f32 1.5, %v393
        %v395 = vmul.f32 %v390, %v394
        %v396 = vmul.f32 %v377, %v395
        %vm397 = vcmp.eq.f32.partialorder %v377, inf
        %v398 = vsel %vm397, %v377, %v396
        %vm399 = vcmp.eq.f32.partialorder %v377, 0.0
        %v400 = vand.u32 %v377, 2147483648
        %v401 = vsel %vm399, %v400, %v398
        %s402 = smul.f32 %s310, %s309
        %v403 = vstv %s402
        %v404 = vmul.f32 %v403, %v389
        %v405 = vmul.f32 %v403, %v401
        %v406 = vmax.f32 %v404, 1e-08
        %v407 = vmax.f32 %v405, 1e-08
        %v408 = vmul.f32 %v406, 1.442695
        %v409 = vpow.pop %v408
        %v410 = vmul.f32 %v407, 1.442695
        %v411 = vpow.pop %v410
        %v412 = vsub.f32 0.0, %v406
        %v413 = vsub.f32 0.0, %v407
        %v414 = vmul.f32 %v412, 1.442695
        %v415 = vpow.pop %v414
        %v416 = vmul.f32 %v413, 1.442695
        %v417 = vpow.pop %v416
        %v418 = vrcp.pop %v406
        %v419 = vrcp.pop %v407
        %vm420 = vcmp.lt.f32.partialorder %v406, 0.01
        %vm421 = vcmp.lt.f32.partialorder %v407, 0.01
        %v422 = vmul.f32 %v406, %v406
        %v423 = vmul.f32 %v407, %v407
        %v424 = vmul.f32 %v422, 0.16666667
        %v425 = vmul.f32 %v423, 0.16666667
        %v426 = vadd.f32 %v424, 1.0
        %v427 = vadd.f32 %v425, 1.0
        %v428 = vsub.f32 %v409, %v415
        %v429 = vsub.f32 %v411, %v417
        %v430 = vmul.f32 %v428, 0.5
        %v431 = vmul.f32 %v429, 0.5
        %v432 = vmul.f32 %v430, %v418
        %v433 = vmul.f32 %v431, %v419
        %v434 = vsel %vm420, %v426, %v432
        %v435 = vsel %vm421, %v427, %v433
        %v436 = vstv %s309
        %v437 = vmul.f32 %v436, %v434
        %v438 = vmul.f32 %v436, %v435
        %v439 = vmul.f32 %v437, %v368
        %v440 = vmul.f32 %v438, %v370
        %441 = vst [vmem:[%s302] sm:$0xff] %v439
        %442 = vst [vmem:[%s302 + $0x8] sm:$0xff] %v440
        %s443 = sand.u32 %s148, 1
        %s444 = scalar_lea.sflag [#allocation4], %s443
        %s445 = sand.u32 %s148, 1
        %s446 = smul.addr %s445, 16
        %s447 = scalar_lea.vmem [#allocation9], %s446
        // Predicated region
        $region49: #{tpu_custom_call.1} parent=35 // pred_check
          %p448 = pneg %p158
        $region50: #{tpu_custom_call.1} parent=35 // pred_check_branch
          %450 = sbr.rel (%p448) target = $region52
        $region51: #{tpu_custom_call.1} parent=35 // pred_region
          %s451 = smul.u32 2, %s30
          %453 = vsyncadd %s444, 0
          %s454 = smul.addr %s29, 2
          %s455 = sadd.s32 %s451, %s454
          %s456 = smul.addr %s455, 8
          %s457 = scalar_lea.hbm %s4, %s456
          %s458 = sshll.u32 %s447, 4
          %s459 = int_to_ptr.vmem [resolvable:$true] %s458
          %s460 = sshll.u32 %s457, 4
          %s461 = int_to_ptr.hbm [resolvable:$true] %s460
          %466 = dma.vmem_to_hbm [thread:$0]  %s459, 256, %s461, %s444, 128, 128, 8
        $region52: #{tpu_custom_call.1} parent=35 // pred_fallthru
          _
      $region36: #{tpu_custom_call.1} parent=5 // pred_fallthru
        _
      %p467 = scmp.le.s32.totalorder 2, %s20
      // Predicated region
      $region53: #{tpu_custom_call.1} parent=5 // pred_check
        %p468 = pneg %p467
      $region54: #{tpu_custom_call.1} parent=5 // pred_check_branch
        %470 = sbr.rel (%p468) target = $region56
      $region55: #{tpu_custom_call.1} parent=5 // pred_region
        %s471 = ssub.s32 %s20, 2
        // Predicated region
        $region57: #{tpu_custom_call.1} parent=55 // pred_check
          %p472 = pneg %p164
        $region58: #{tpu_custom_call.1} parent=55 // pred_check_branch
          %474 = sbr.rel (%p472) target = $region60
        $region59: #{tpu_custom_call.1} parent=55 // pred_region
          %s475 = sand.u32 %s149, 1
          %s476 = scalar_lea.sflag [#allocation4], %s475
          %s477 = sand.u32 %s149, 1
          %s478 = smul.addr %s477, 16
          %s479 = scalar_lea.vmem [#allocation9], %s478
          %481 = dma.done %s476, 256
        $region60: #{tpu_custom_call.1} parent=55 // pred_fallthru
          _
      $region56: #{tpu_custom_call.1} parent=5 // pred_fallthru
        _
    $region6: #{tpu_custom_call.1} parent=1 // loop_footer
      %s24 = sadd.s32 1, %s20
    $region7: #{tpu_custom_call.1} parent=1 // loop_footer_branch
      %19 = sbr.rel target = $region3
    $region8: #{tpu_custom_call.1} parent=1 // loop_exit
      _
    %482 = vsyncpa [#allocation3], 1
    %s483 = scalar_lea.sflag [#allocation3], 1
    %484 = vsyncpa %s483, 1
    %485 = vsyncpa [#allocation8], 1
    %s486 = scalar_lea.sflag [#allocation8], 1
    %487 = vsyncpa %s486, 1
    %488 = vsyncpa [#allocation4], 1
    %s489 = scalar_lea.sflag [#allocation4], 1
    %490 = vsyncpa %s489, 1
    %491 = vsyncpa [#allocation5], 1
    %s492 = scalar_lea.sflag [#allocation5], 1
    %493 = vsyncpa %s492, 1

</llo_original>
